<compile_context>
chip_gen: v5e
topology: v5e:2x2
jax: 0.10.0
libtpu: 0.0.40
codegen_flags: <defaults>
</compile_context>

<pallas_src>
import jax
import jax.numpy as jnp
from jax import lax
from jax.experimental import pallas as pl
from jax.experimental.pallas import tpu as pltpu

LANE = 128
_SUBLANE_BF16 = 16  # bf16 packs 16 sublanes per vreg


def _round_up(x, m):
    return (x + m - 1) // m * m


# ----------------------------- backbone body ---------------------------------
def _patch_matmul_kernel(p_ref, w_ref, b_ref, o_ref):
    # bf16 x bf16 -> f32 accumulate on the MXU, bias add fused (no extra pass).
    acc = jnp.dot(p_ref[...], w_ref[...], preferred_element_type=jnp.float32)
    o_ref[...] = acc + b_ref[...]


def patch_conv(x_nchw, weight, bias, stride, *, tm=512):
    """Strided (kernel_size == stride) conv as a tiled Pallas MXU matmul.

    Returns channels-last features (N, Ho, Wo, Cout)."""
    n, c, h, w = x_nchw.shape
    cout = weight.shape[0]
    s = stride
    ho, wo = h // s, w // s
    m_dim = n * ho * wo
    k_dim = c * s * s

    # glue: im2col patch extraction (layout plumbing; one XLA copy of x).
    # TODO(synk): fold patch extraction into the kernel index_map (NHWC-blocked
    # load) to save this HBM round trip of the activation.
    p = x_nchw.reshape(n, c, ho, s, wo, s)
    p = p.transpose(0, 2, 4, 3, 5, 1).reshape(m_dim, k_dim)        # (M, K), K=(i,j,c)
    w_mat = weight.transpose(2, 3, 1, 0).reshape(k_dim, cout)      # (K, Cout)

    # Lane-dense output: pad Cout to a full 128-lane width; pad M to tile size.
    cout_pad = _round_up(cout, LANE)
    tm = _round_up(max(_SUBLANE_BF16,
                       min(tm, _round_up(m_dim, _SUBLANE_BF16))), _SUBLANE_BF16)
    m_pad = _round_up(m_dim, tm)

    p_bf = jnp.pad(p, ((0, m_pad - m_dim), (0, 0))).astype(jnp.bfloat16)
    w_bf = jnp.pad(w_mat, ((0, 0), (0, cout_pad - cout))).astype(jnp.bfloat16)
    b_f32 = jnp.pad(bias, (0, cout_pad - cout)).reshape(1, cout_pad).astype(jnp.float32)

    out = pl.pallas_call(
        _patch_matmul_kernel,
        out_shape=jax.ShapeDtypeStruct((m_pad, cout_pad), jnp.float32),
        grid=(m_pad // tm,),
        in_specs=[
            pl.BlockSpec((tm, k_dim), lambda i: (i, 0)),        # LHS tiled over M
            pl.BlockSpec((k_dim, cout_pad), lambda i: (0, 0)),  # weights resident
            pl.BlockSpec((1, cout_pad), lambda i: (0, 0)),      # bias resident
        ],
        out_specs=pl.BlockSpec((tm, cout_pad), lambda i: (i, 0)),
        compiler_params=pltpu.CompilerParams(
            dimension_semantics=("parallel",)),                 # M tiles independent
    )(p_bf, w_bf, b_f32)

    return out[:m_dim, :cout].reshape(n, ho, wo, cout)          # NHWC, padding sliced


# --------------------- mask nearest-neighbour interpolation ------------------
def mask_nearest_interp(mask_bool, out_hw):
    """F.interpolate(m[None].float(), size=out_hw, mode='nearest') -> bool.

    Nearest-neighbour resize is pure data movement: an integer-index gather
    with PyTorch's rule src = floor(dst * in / out) (exact integer arithmetic,
    no f32 rounding; one-hot matmul path removed per review)."""
    _, h, w = mask_bool.shape
    ho, wo = int(out_hw[0]), int(out_hw[1])
    idx_h = (jnp.arange(ho, dtype=jnp.int32) * h) // ho
    idx_w = (jnp.arange(wo, dtype=jnp.int32) * w) // wo
    return mask_bool[:, idx_h[:, None], idx_w[None, :]]


# ------------------------------- BackboneBase --------------------------------
class BackboneBasePallas:
    """JAX/Pallas port of BackboneBase (ResNet path, return_interm_layers=False).

    Original: strides=[32], num_channels=[2048]; scaled down to stride=8,
    num_channels=[64] for small synthetic shapes.  Feature maps are returned
    channels-last (N, H, W, C): lane-dense channel dim, no trailing transpose.
    """

    def __init__(self, in_channels=3, out_channels=64, stride=8, *, key):
        self.strides = [stride]
        self.num_channels = [out_channels]
        kw, kb = jax.random.split(key)
        fan_in = in_channels * stride * stride
        self.weight = (jax.random.normal(
            kw, (out_channels, in_channels, stride, stride), jnp.float32)
            / jnp.sqrt(fan_in))
        self.bias = jax.random.normal(kb, (out_channels,), jnp.float32) * 0.01

    def forward(self, tensors, mask, *, tm=512):
        # xs = self.body(tensor_list.tensors)  -> {'0': feature map}
        xs = {"0": patch_conv(tensors, self.weight, self.bias,
                              self.strides[0], tm=tm)}
        out = {}
        for name, x in xs.items():
            assert mask is not None
            m_out = mask_nearest_interp(mask, x.shape[1:3])   # NHWC spatial dims
            out[name] = {"tensors": x, "mask": m_out}         # NestedTensor(x, mask)
        return out


if __name__ == "__main__":
    key = jax.random.PRNGKey(0)
    k_x, k_param = jax.random.split(key)

    N, C, H, W = 2, 3, 32, 32
    STRIDE, COUT = 8, 64
    HO, WO = H // STRIDE, W // STRIDE

    x = jax.random.normal(k_x, (N, C, H, W), jnp.float32)
    # NestedTensor-style padding mask: True = padded pixel.
    valid_h = jnp.array([32, 24])
    valid_w = jnp.array([32, 16])
    rows = jnp.arange(H)[None, :, None]
    cols = jnp.arange(W)[None, None, :]
    mask = (rows >= valid_h[:, None, None]) | (cols >= valid_w[:, None, None])

    model = BackboneBasePallas(in_channels=C, out_channels=COUT, stride=STRIDE,
                               key=k_param)
    # tm=16 makes the M grid 2 steps even at these tiny shapes (exercises the
    # pipelined, parallel-semantics path).
    out = model.forward(x, mask, tm=16)

    feat = jax.block_until_ready(out["0"]["tensors"])
    m_out = jax.block_until_ready(out["0"]["mask"])

    assert feat.shape == (N, HO, WO, COUT) and feat.dtype == jnp.float32
    assert m_out.shape == (N, HO, WO) and m_out.dtype == jnp.bool_

    # Correctness: reference conv on the same bf16-rounded inputs (f32 accum).
    x_bf = x.astype(jnp.bfloat16).astype(jnp.float32)
    w_bf = model.weight.astype(jnp.bfloat16).astype(jnp.float32)
    ref = lax.conv_general_dilated(
        x_bf, w_bf, window_strides=(STRIDE, STRIDE), padding="VALID",
        dimension_numbers=("NCHW", "OIHW", "NCHW"),
        precision=lax.Precision.HIGHEST)
    ref = (ref + model.bias[None, :, None, None]).transpose(0, 2, 3, 1)  # NHWC
    assert jnp.allclose(feat, ref, atol=1e-2, rtol=1e-2), \
        float(jnp.max(jnp.abs(feat - ref)))

    # Mask reference: H/HO == W/WO == STRIDE here, so nearest == strided slice.
    assert bool(jnp.array_equal(m_out, mask[:, ::STRIDE, ::STRIDE]))

    print("KERNEL_OK")
</pallas_src>

<mosaic_0001>
module attributes {stable_mosaic.version = 11 : i64} {
  func.func @_patch_matmul_kernel(%arg0: i32, %arg1: memref<16x192xbf16, #tpu.memory_space<vmem>>, %arg2: memref<192x128xbf16, #tpu.memory_space<vmem>>, %arg3: memref<1x128xf32, #tpu.memory_space<vmem>>, %arg4: memref<16x128xf32, #tpu.memory_space<vmem>>) attributes {dimension_semantics = [#tpu.dimension_semantics<parallel>], iteration_bounds = array<i64: 2>, scalar_prefetch = 0 : i64, scratch_operands = 0 : i64, tpu.core_type = #tpu.core_type<tc>, window_params = [{transform_indices = @transform_0, window_bounds = array<i64: 16, 192>}, {pipeline_mode = #tpu.pipeline_mode<synchronous>, transform_indices = @transform_1, window_bounds = array<i64: 192, 128>}, {pipeline_mode = #tpu.pipeline_mode<synchronous>, transform_indices = @transform_2, window_bounds = array<i64: 1, 128>}, {transform_indices = @transform_3, window_bounds = array<i64: 16, 128>}]} {
    %c0 = arith.constant 0 : index
    %c0_0 = arith.constant 0 : index
    %0 = vector.load %arg1[%c0, %c0_0] : memref<16x192xbf16, #tpu.memory_space<vmem>>, vector<16x192xbf16>
    %c0_1 = arith.constant 0 : index
    %c0_2 = arith.constant 0 : index
    %1 = vector.load %arg2[%c0_1, %c0_2] : memref<192x128xbf16, #tpu.memory_space<vmem>>, vector<192x128xbf16>
    %cst = arith.constant dense<0.000000e+00> : vector<16x128xf32>
    %2 = tpu.matmul %0, %1, %cst {dimension_numbers = #tpu.dot_dimension_numbers<[1], [0], [0], [1], [0, 0, 1, 1], [], []>} : vector<16x192xbf16>, vector<192x128xbf16>, vector<16x128xf32> -> vector<16x128xf32>
    %c0_3 = arith.constant 0 : index
    %c0_4 = arith.constant 0 : index
    %3 = vector.load %arg3[%c0_3, %c0_4] : memref<1x128xf32, #tpu.memory_space<vmem>>, vector<1x128xf32>
    %4 = vector.broadcast %3 : vector<1x128xf32> to vector<16x128xf32>
    %5 = arith.addf %2, %4 : vector<16x128xf32>
    %c0_5 = arith.constant 0 : index
    %c0_6 = arith.constant 0 : index
    %6 = vector.load %arg4[%c0_5, %c0_6] : memref<16x128xf32, #tpu.memory_space<vmem>>, vector<16x128xf32>
    tpu.vector_store %arg4[%c0_5, %c0_6], %5 {strides = array<i32>} : memref<16x128xf32, #tpu.memory_space<vmem>>, vector<16x128xf32>,
    return
  }
  func.func @transform_0(%arg0: i32) -> (i32, i32) {
    %c0_i32 = arith.constant 0 : i32
    %c0_i32_0 = arith.constant 0 : i32
    return %arg0, %c0_i32 : i32, i32
  }
  func.func @transform_1(%arg0: i32) -> (i32, i32) {
    %c0_i32 = arith.constant 0 : i32
    %c0_i32_0 = arith.constant 0 : i32
    %c0_i32_1 = arith.constant 0 : i32
    return %c0_i32, %c0_i32_0 : i32, i32
  }
  func.func @transform_2(%arg0: i32) -> (i32, i32) {
    %c0_i32 = arith.constant 0 : i32
    %c0_i32_0 = arith.constant 0 : i32
    %c0_i32_1 = arith.constant 0 : i32
    return %c0_i32, %c0_i32_0 : i32, i32
  }
  func.func @transform_3(%arg0: i32) -> (i32, i32) {
    %c0_i32 = arith.constant 0 : i32
    %c0_i32_0 = arith.constant 0 : i32
    return %arg0, %c0_i32 : i32, i32
  }
}

</mosaic_0001>

<llo_original>
// kernel: tpu_custom_call.1
$region0: #{tpu_custom_call.1}
  #allocation0 [shape = 'u32[]', space=smem, size = 0x4, offset = 0x4, fixed_abs, tag = 'smem constant byte address 0x4 - core index']
  #allocation1 [shape = 'u32[72,128]{1,0:T(1,128)}', space=vmem, size = 0x9000, scoped, tag = 'internal scratch']
  %s0 = inlined_call_operand.hbm [shape: bf16[32,192], index: 0, kind: input, shape index: {}]
  %s1 = inlined_call_operand.hbm [shape: bf16[192,128], index: 1, kind: input, shape index: {}]
  %s2 = inlined_call_operand.vmem [shape: f32[1,128], index: 2, kind: input, shape index: {}]
  %s3 = inlined_call_operand.hbm [shape: f32[32,128], index: 3, kind: output, shape index: {}]
  %s4 = sld [smem:[#allocation0]]
  $region53: #{tpu_custom_call.1} parent=0
    _
  %s6 = ssub.s32 1, %s4
  %s7 = scalar_select 0, %s6, %s4
  $region1: #{tpu_custom_call.1} parent=0
    #allocation2 [shape = 'u8[16384]{0}', space=vmem, size = 0x4000, scoped, tag = 'input window, operand 0']
    #allocation3 [shape = 's32[2]{0}', space=sflag, size = 0x8, scoped, tag = 'scoped memory for tpu_custom_call.1']
    #allocation4 [shape = 's32[2]{0}', space=sflag, size = 0x8, scoped, tag = 'scoped memory for tpu_custom_call.1']
    #allocation5 [shape = 'u8[49152]{0}', space=vmem, size = 0xc000, scoped, tag = 'input window, operand 1, single buffered']
    #allocation6 [shape = 's32[1]{0}', space=sflag, size = 0x4, scoped, tag = 'scoped memory for tpu_custom_call.1']
    #allocation7 [shape = 'u8[16384]{0}', space=vmem, size = 0x4000, scoped, tag = 'output window, operand 0']
    %8 = vsyncpa [#allocation3], 0
    %s9 = scalar_lea.sflag [#allocation3], 1
    %10 = vsyncpa %s9, 0
    %11 = vsyncpa [#allocation6], 0
    %12 = vsyncpa [#allocation4], 0
    %s13 = scalar_lea.sflag [#allocation4], 1
    %14 = vsyncpa %s13, 0
    loop: start=0, step=1, limit=4
    $region2: #{tpu_custom_call.1} parent=1 // loop_pre_header
      _
    $region3: #{tpu_custom_call.1} parent=1 // loop_header
      %s16 = sphi 0, %s20
      %p17 = scmp.ge.s32.totalorder %s16, 4
      %s26 = sphi 0, %s28
      %s29 = sphi 0, %s26
      %s30 = sphi 0, %s29
      %s46 = sphi 0, %s30
      %s50 = sphi 0, %s50
      %s52 = sphi 0, %s50
      %s53 = sphi 0, %s52
      %s67 = sphi 0, %s53
      %s71 = sphi 0, %s71
      %s73 = sphi 0, %s71
      %s74 = sphi 0, %s73
      %s88 = sphi 0, %s74
      %s94 = sphi 0, %s96
      %s97 = sphi 0, %s94
      %s98 = sphi 0, %s97
      %s114 = sphi 0, %s98
    $region4: #{tpu_custom_call.1} parent=1 // loop_header_branch
      %19 = sbr.rel (%p17) target = $region8
    $region5: #{tpu_custom_call.1} parent=1 // loop_body
      %s21 = ssub.s32 %s16, 1
      %s22 = ssub.s32 %s16, 2
      %s23 = sadd.s32 %s16, 1
      %s24 = ssub.s32 %s16, %s23
      %p25 = scmp.eq.s32.totalorder %s24, 0
      %s27 = sadd.s32 %s26, 1
      %s28 = scalar_select %p25, %s26, %s27
      %p31 = pneg %p25
      %p32 = scmp.eq.s32.totalorder %s16, 1
      %p33 = por %p31, %p32
      %p34 = scmp.ne.s32.totalorder %s26, %s29
      %p35 = scmp.eq.s32.totalorder %s16, 0
      %p36 = por %p34, %p35
      %p37 = scmp.ne.s32.totalorder %s26, %s29
      %p38 = scmp.eq.s32.totalorder %s21, 1
      %p39 = por %p37, %p38
      %p40 = scmp.ne.s32.totalorder %s29, %s30
      %p41 = scmp.eq.s32.totalorder %s21, 0
      %p42 = por %p40, %p41
      %p43 = scmp.ne.s32.totalorder %s29, %s30
      %p44 = scmp.eq.s32.totalorder %s22, 1
      %p45 = por %p43, %p44
      %p47 = scmp.ne.s32.totalorder %s30, %s46
      %p48 = scmp.eq.s32.totalorder %s22, 0
      %p49 = por %p47, %p48
      %s51 = sadd.s32 %s50, 1
      %p54 = scmp.eq.s32.totalorder %s16, 1
      %p55 = scmp.ne.s32.totalorder %s50, %s52
      %p56 = scmp.eq.s32.totalorder %s16, 0
      %p57 = por %p55, %p56
      %p58 = scmp.ne.s32.totalorder %s50, %s52
      %p59 = scmp.eq.s32.totalorder %s21, 1
      %p60 = por %p58, %p59
      %p61 = scmp.ne.s32.totalorder %s52, %s53
      %p62 = scmp.eq.s32.totalorder %s21, 0
      %p63 = por %p61, %p62
      %p64 = scmp.ne.s32.totalorder %s52, %s53
      %p65 = scmp.eq.s32.totalorder %s22, 1
      %p66 = por %p64, %p65
      %p68 = scmp.ne.s32.totalorder %s53, %s67
      %p69 = scmp.eq.s32.totalorder %s22, 0
      %p70 = por %p68, %p69
      %s72 = sadd.s32 %s71, 1
      %p75 = scmp.eq.s32.totalorder %s16, 1
      %p76 = scmp.ne.s32.totalorder %s71, %s73
      %p77 = scmp.eq.s32.totalorder %s16, 0
      %p78 = por %p76, %p77
      %p79 = scmp.ne.s32.totalorder %s71, %s73
      %p80 = scmp.eq.s32.totalorder %s21, 1
      %p81 = por %p79, %p80
      %p82 = scmp.ne.s32.totalorder %s73, %s74
      %p83 = scmp.eq.s32.totalorder %s21, 0
      %p84 = por %p82, %p83
      %p85 = scmp.ne.s32.totalorder %s73, %s74
      %p86 = scmp.eq.s32.totalorder %s22, 1
      %p87 = por %p85, %p86
      %p89 = scmp.ne.s32.totalorder %s74, %s88
      %p90 = scmp.eq.s32.totalorder %s22, 0
      %p91 = por %p89, %p90
      %s92 = ssub.s32 %s16, %s23
      %p93 = scmp.eq.s32.totalorder %s92, 0
      %s95 = sadd.s32 %s94, 1
      %s96 = scalar_select %p93, %s94, %s95
      %p99 = pneg %p93
      %p100 = scmp.eq.s32.totalorder %s16, 1
      %p101 = por %p99, %p100
      %p102 = scmp.ne.s32.totalorder %s94, %s97
      %p103 = scmp.eq.s32.totalorder %s16, 0
      %p104 = por %p102, %p103
      %p105 = scmp.ne.s32.totalorder %s94, %s97
      %p106 = scmp.eq.s32.totalorder %s21, 1
      %p107 = por %p105, %p106
      %p108 = scmp.ne.s32.totalorder %s97, %s98
      %p109 = scmp.eq.s32.totalorder %s21, 0
      %p110 = por %p108, %p109
      %p111 = scmp.ne.s32.totalorder %s97, %s98
      %p112 = scmp.eq.s32.totalorder %s22, 1
      %p113 = por %p111, %p112
      %p115 = scmp.ne.s32.totalorder %s98, %s114
      %p116 = scmp.eq.s32.totalorder %s22, 0
      %p117 = por %p115, %p116
      %p118 = scmp.le.s32.totalorder 1, %s16
      %p119 = scmp.lt.s32.totalorder %s16, 3
      %p120 = pnand %p118, %p119
      %p121 = pneg %p120
      // Predicated region
      $region9: #{tpu_custom_call.1} parent=5 // pred_check
        _
      $region10: #{tpu_custom_call.1} parent=5 // pred_check_branch
        %123 = sbr.rel (%p120) target = $region12
      $region11: #{tpu_custom_call.1} parent=5 // pred_region
        %s124 = ssub.s32 %s16, 1
        // Predicated region
        $region13: #{tpu_custom_call.1} parent=11 // pred_check
          %p125 = pneg %p63
        $region14: #{tpu_custom_call.1} parent=11 // pred_check_branch
          %127 = sbr.rel (%p125) target = $region16
        $region15: #{tpu_custom_call.1} parent=11 // pred_region
          %129 = vsyncadd [#allocation6], 0
          %s130 = sshll.u32 %s1, 4
          %s131 = int_to_ptr.hbm [resolvable:$true] %s130
          %s132 = sshll.u32 [#allocation5], 4
          %s133 = int_to_ptr.vmem [resolvable:$true] %s132
          %138 = dma.hbm_to_vmem [thread:$0]  %s131, 1536, %s133, [#allocation6], 64, 64, 4
        $region16: #{tpu_custom_call.1} parent=11 // pred_fallthru
          _
        // Predicated region
        $region17: #{tpu_custom_call.1} parent=11 // pred_check
          %p139 = pneg %p84
        $region18: #{tpu_custom_call.1} parent=11 // pred_check_branch
          %141 = sbr.rel (%p139) target = $region20
        $region19: #{tpu_custom_call.1} parent=11 // pred_region
          _
        $region20: #{tpu_custom_call.1} parent=11 // pred_fallthru
          _
      $region12: #{tpu_custom_call.1} parent=5 // pred_fallthru
        _
      %p142 = scmp.lt.s32.totalorder %s16, 2
      // Predicated region
      $region21: #{tpu_custom_call.1} parent=5 // pred_check
        %p143 = pneg %p142
      $region22: #{tpu_custom_call.1} parent=5 // pred_check_branch
        %145 = sbr.rel (%p143) target = $region24
      $region23: #{tpu_custom_call.1} parent=5 // pred_region
        // Predicated region
        $region25: #{tpu_custom_call.1} parent=23 // pred_check
          %p146 = pneg %p36
        $region26: #{tpu_custom_call.1} parent=23 // pred_check_branch
          %148 = sbr.rel (%p146) target = $region28
        $region27: #{tpu_custom_call.1} parent=23 // pred_region
          %s149 = sand.u32 %s26, 1
          %s150 = scalar_lea.sflag [#allocation3], %s149
          %s151 = sand.u32 %s26, 1
          %s152 = smul.addr %s151, 16
          %s153 = scalar_lea.vmem [#allocation2], %s152
          %s154 = smul.u32 2, %s16
          %156 = vsyncadd %s150, 0
          %s157 = smul.addr %s154, 2
          %s158 = smul.addr %s157, 4
          %s159 = scalar_lea.hbm %s0, %s158
          %s160 = sshll.u32 %s159, 4
          %s161 = int_to_ptr.hbm [resolvable:$true] %s160
          %s162 = sshll.u32 %s153, 4
          %s163 = int_to_ptr.vmem [resolvable:$true] %s162
          %168 = dma.hbm_to_vmem [thread:$0]  %s161, 256, %s163, %s150, 128, 128, 8
        $region28: #{tpu_custom_call.1} parent=23 // pred_fallthru
          _
      $region24: #{tpu_custom_call.1} parent=5 // pred_fallthru
        _
      %p169 = scmp.le.s32.totalorder 1, %s16
      %p170 = scmp.lt.s32.totalorder %s16, 3
      %p171 = pnand %p169, %p170
      %p172 = pneg %p171
      // Predicated region
      $region29: #{tpu_custom_call.1} parent=5 // pred_check
        _
      $region30: #{tpu_custom_call.1} parent=5 // pred_check_branch
        %174 = sbr.rel (%p171) target = $region32
      $region31: #{tpu_custom_call.1} parent=5 // pred_region
        %s175 = ssub.s32 %s16, 1
        %s176 = sand.u32 %s29, 1
        %s177 = scalar_lea.sflag [#allocation3], %s176
        %s178 = sand.u32 %s29, 1
        %s179 = smul.addr %s178, 16
        %s180 = scalar_lea.vmem [#allocation2], %s179
        // Predicated region
        $region33: #{tpu_custom_call.1} parent=31 // pred_check
          %p181 = pneg %p42
        $region34: #{tpu_custom_call.1} parent=31 // pred_check_branch
          %183 = sbr.rel (%p181) target = $region36
        $region35: #{tpu_custom_call.1} parent=31 // pred_region
          %185 = dma.done %s177, 256
        $region36: #{tpu_custom_call.1} parent=31 // pred_fallthru
          _
        // Predicated region
        $region37: #{tpu_custom_call.1} parent=31 // pred_check
          %p186 = pneg %p63
        $region38: #{tpu_custom_call.1} parent=31 // pred_check_branch
          %188 = sbr.rel (%p186) target = $region40
        $region39: #{tpu_custom_call.1} parent=31 // pred_region
          %190 = dma.done [#allocation6], 1536
        $region40: #{tpu_custom_call.1} parent=31 // pred_fallthru
          _
        %s191 = sand.u32 %s29, 1
        %s192 = scalar_lea.sflag [#allocation3], %s191
        %s193 = sand.u32 %s29, 1
        %s194 = smul.addr %s193, 16
        %s195 = scalar_lea.vmem [#allocation2], %s194
        %p196 = pneg %p42
        %p197 = pneg %p39
        %p198 = pneg %p63
        %p199 = pneg %p60
        %p200 = pneg %p84
        %p201 = pneg %p81
        %p202 = pneg %p110
        %p203 = pneg %p107
        %s204 = sand.u32 %s97, 1
        %s205 = scalar_lea.sflag [#allocation4], %s204
        %s206 = sand.u32 %s97, 1
        %s207 = smul.addr %s206, 16
        %s208 = scalar_lea.vmem [#allocation7], %s207
        %s209 = smul.u32 2, %s21
        %s210 = smul.u32 2, %s21
        %v212 = vld [vmem:[%s180] sm:$0xff]
        %v213 = vld [vmem:[%s180 + $0x8] sm:$0xff]
        %v214 = vld [vmem:[#allocation5] sm:$0xf]
        %v215 = vld [vmem:[#allocation5 + $0x4] sm:$0xf]
        %v216 = vld [vmem:[#allocation5 + $0x8] sm:$0xf]
        %v217 = vld [vmem:[#allocation5 + $0xc] sm:$0xf]
        %v218 = vld [vmem:[#allocation5 + $0x10] sm:$0xf]
        %v219 = vld [vmem:[#allocation5 + $0x14] sm:$0xf]
        %v220 = vld [vmem:[#allocation5 + $0x18] sm:$0xf]
        %v221 = vld [vmem:[#allocation5 + $0x1c] sm:$0xf]
        %v222 = vld [vmem:[#allocation5 + $0x20] sm:$0xf]
        %v223 = vld [vmem:[#allocation5 + $0x24] sm:$0xf]
        %v224 = vld [vmem:[#allocation5 + $0x28] sm:$0xf]
        %v225 = vld [vmem:[#allocation5 + $0x2c] sm:$0xf]
        %v226 = vld [vmem:[#allocation5 + $0x30] sm:$0xf]
        %v227 = vld [vmem:[#allocation5 + $0x34] sm:$0xf]
        %v228 = vld [vmem:[#allocation5 + $0x38] sm:$0xf]
        %v229 = vld [vmem:[#allocation5 + $0x3c] sm:$0xf]
        %v230 = vld [vmem:[#allocation5 + $0x40] sm:$0xf]
        %v231 = vld [vmem:[#allocation5 + $0x44] sm:$0xf]
        %v232 = vld [vmem:[#allocation5 + $0x48] sm:$0xf]
        %v233 = vld [vmem:[#allocation5 + $0x4c] sm:$0xf]
        %v234 = vld [vmem:[#allocation5 + $0x50] sm:$0xf]
        %v235 = vld [vmem:[#allocation5 + $0x54] sm:$0xf]
        %v236 = vld [vmem:[#allocation5 + $0x58] sm:$0xf]
        %v237 = vld [vmem:[#allocation5 + $0x5c] sm:$0xf]
        %v238 = vld [vmem:[%s2] sm:$0x1]
        %v240 = vperm.slane %v238, 0
        %v244 = vunpack.c.l.b16 %v212
        %v245 = vunpack.c.h.b16 %v212
        %v246 = vunpack.c.l.b16 %v213
        %v247 = vunpack.c.h.b16 %v213
        %v248 = vpack.c.b16 %v246, %v244
        %v249 = vpack.c.b16 %v247, %v245
        %v275 = vunpack.c.l.b16 %v214
        %v276 = vunpack.c.l.b16 %v215
        %v277 = vunpack.c.l.b16 %v216
        %v278 = vunpack.c.l.b16 %v217
        %v279 = vunpack.c.l.b16 %v218
        %v280 = vunpack.c.l.b16 %v219
        %v281 = vunpack.c.l.b16 %v220
        %v282 = vunpack.c.l.b16 %v221
        %v283 = vunpack.c.l.b16 %v222
        %v284 = vunpack.c.l.b16 %v223
        %v285 = vunpack.c.l.b16 %v224
        %v286 = vunpack.c.l.b16 %v225
        %v287 = vunpack.c.l.b16 %v226
        %v288 = vunpack.c.l.b16 %v227
        %v289 = vunpack.c.l.b16 %v228
        %v290 = vunpack.c.l.b16 %v229
        %v291 = vunpack.c.l.b16 %v230
        %v292 = vunpack.c.l.b16 %v231
        %v293 = vunpack.c.l.b16 %v232
        %v294 = vunpack.c.l.b16 %v233
        %v295 = vunpack.c.l.b16 %v234
        %v296 = vunpack.c.l.b16 %v235
        %v297 = vunpack.c.l.b16 %v236
        %v298 = vunpack.c.l.b16 %v237
        %v299 = vpack.c.b16 %v276, %v275
        %v300 = vpack.c.b16 %v278, %v277
        %v301 = vpack.c.b16 %v280, %v279
        %v302 = vpack.c.b16 %v282, %v281
        %v303 = vpack.c.b16 %v284, %v283
        %v304 = vpack.c.b16 %v286, %v285
        %v305 = vpack.c.b16 %v288, %v287
        %v306 = vpack.c.b16 %v290, %v289
        %v307 = vpack.c.b16 %v292, %v291
        %v308 = vpack.c.b16 %v294, %v293
        %v309 = vpack.c.b16 %v296, %v295
        %v310 = vpack.c.b16 %v298, %v297
        %vm323 = vcmask 523264
        %v325 = vsel %vm323, %v249, 0
        %327 = vmatpush.bf16.msra.mxu0 %v306
        %328 = vmatpush.bf16.msra.mxu0 %v305
        %329 = vmatpush.bf16.msra.mxu0 %v304
        %330 = vmatpush.bf16.msra.mxu0 %v303
        %331 = vmatpush.bf16.msra.mxu0 %v302
        %332 = vmatpush.bf16.msra.mxu0 %v301
        %333 = vmatpush.bf16.msra.mxu0 %v300
        %334 = vmatpush.bf16.msra.mxu0 %v299
        %335 = vmatmul.bf16.gmra.mxu0 %v248
        %v336 = vpop.f32.mrf.mxu0
        %v337 = vadd.f32 %v240, %v336
        %v338 = vpop.f32.mrf.mxu0
        %v339 = vadd.f32 %v240, %v338
        %340 = vdwg.mxu0
        %341 = vmatpush.bf16.msra.mxu0 0
        %342 = vmatpush.bf16.msra.mxu0 0
        %343 = vmatpush.bf16.msra.mxu0 0
        %344 = vmatpush.bf16.msra.mxu0 0
        %345 = vmatpush.bf16.msra.mxu0 %v310
        %346 = vmatpush.bf16.msra.mxu0 %v309
        %347 = vmatpush.bf16.msra.mxu0 %v308
        %348 = vmatpush.bf16.msra.mxu0 %v307
        %349 = vmatmul.bf16.gmra.mxu0 %v325
        %v350 = vpop.f32.mrf.mxu0
        %v351 = vadd.f32 %v337, %v350
        %v352 = vpop.f32.mrf.mxu0
        %v353 = vadd.f32 %v339, %v352
        %354 = vdwg.mxu0
        %355 = vst [vmem:[%s208] sm:$0xff] %v351
        %356 = vst [vmem:[%s208 + $0x8] sm:$0xff] %v353
        %s357 = sand.u32 %s97, 1
        %s358 = scalar_lea.sflag [#allocation4], %s357
        %s359 = sand.u32 %s97, 1
        %s360 = smul.addr %s359, 16
        %s361 = scalar_lea.vmem [#allocation7], %s360
        // Predicated region
        $region41: #{tpu_custom_call.1} parent=31 // pred_check
          %p362 = pneg %p107
        $region42: #{tpu_custom_call.1} parent=31 // pred_check_branch
          %364 = sbr.rel (%p362) target = $region44
        $region43: #{tpu_custom_call.1} parent=31 // pred_region
          %s365 = smul.u32 2, %s21
          %367 = vsyncadd %s358, 0
          %s368 = smul.addr %s365, 8
          %s369 = scalar_lea.hbm %s3, %s368
          %s370 = sshll.u32 %s361, 4
          %s371 = int_to_ptr.vmem [resolvable:$true] %s370
          %s372 = sshll.u32 %s369, 4
          %s373 = int_to_ptr.hbm [resolvable:$true] %s372
          %378 = dma.vmem_to_hbm [thread:$0]  %s371, 256, %s373, %s358, 128, 128, 8
        $region44: #{tpu_custom_call.1} parent=31 // pred_fallthru
          _
      $region32: #{tpu_custom_call.1} parent=5 // pred_fallthru
        _
      %p379 = scmp.le.s32.totalorder 2, %s16
      // Predicated region
      $region45: #{tpu_custom_call.1} parent=5 // pred_check
        %p380 = pneg %p379
      $region46: #{tpu_custom_call.1} parent=5 // pred_check_branch
        %382 = sbr.rel (%p380) target = $region48
      $region47: #{tpu_custom_call.1} parent=5 // pred_region
        %s383 = ssub.s32 %s16, 2
        // Predicated region
        $region49: #{tpu_custom_call.1} parent=47 // pred_check
          %p384 = pneg %p113
        $region50: #{tpu_custom_call.1} parent=47 // pred_check_branch
          %386 = sbr.rel (%p384) target = $region52
        $region51: #{tpu_custom_call.1} parent=47 // pred_region
          %s387 = sand.u32 %s98, 1
          %s388 = scalar_lea.sflag [#allocation4], %s387
          %s389 = sand.u32 %s98, 1
          %s390 = smul.addr %s389, 16
          %s391 = scalar_lea.vmem [#allocation7], %s390
          %393 = dma.done %s388, 256
        $region52: #{tpu_custom_call.1} parent=47 // pred_fallthru
          _
      $region48: #{tpu_custom_call.1} parent=5 // pred_fallthru
        _
    $region6: #{tpu_custom_call.1} parent=1 // loop_footer
      %s20 = sadd.s32 1, %s16
    $region7: #{tpu_custom_call.1} parent=1 // loop_footer_branch
      %15 = sbr.rel target = $region3
    $region8: #{tpu_custom_call.1} parent=1 // loop_exit
      _
    %394 = vsyncpa [#allocation3], 1
    %s395 = scalar_lea.sflag [#allocation3], 1
    %396 = vsyncpa %s395, 1
    %397 = vsyncpa [#allocation6], 1
    %398 = vsyncpa [#allocation4], 1
    %s399 = scalar_lea.sflag [#allocation4], 1
    %400 = vsyncpa %s399, 1

</llo_original>
